<compile_context>
chip_gen: v7x
topology: tpu7x:2x2x1
jax: 0.10.0
libtpu: 0.0.40
codegen_flags: <defaults>
</compile_context>

<pallas_src>
import functools

import jax
import jax.numpy as jnp
from jax.experimental import pallas as pl
from jax.experimental.pallas import tpu as pltpu


def _fused_conv_relu_conv_kernel(x_ref, w1_ref, b1_ref, w2_ref, b2_ref, o_ref,
                                 im1_ref, im2_ref, *, H, W, KH, KW):
    """Fused conv1 -> ReLU -> conv2 for a block of `bb` images.

    x_ref  : (bb, C0, H*W)      NCHW input, spatial flattened onto the lane axis
    w1_ref : (C1, KH*KW*C0)     conv1 weights, tap-major ((kh,kw) outer, c_in inner)
    b1_ref : (C1, 1)
    w2_ref : (C2, KH*KW*C1)     conv2 weights, same tap ordering
    b2_ref : (C2, 1)
    o_ref  : (bb, C2, OH2*OW2)  lane-dense output block
    im1_ref: (KH*KW*C0, H*W)    VMEM scratch: conv1 im2col
    im2_ref: (KH*KW*C1, H*W)    VMEM scratch: conv2 im2col
    """
    bb, C0, HW = x_ref.shape
    C1 = w1_ref.shape[0]
    C2 = w2_ref.shape[0]
    OH1, OW1 = H - KH + 1, W - KW + 1
    OH2, OW2 = OH1 - KH + 1, OW1 - KW + 1

    # Hygiene: the last (kh*W + kw) lanes of each im2col row-group are never
    # written below.  They only ever feed output columns that get discarded
    # (padded-grid positions), but keep them at a defined value anyway.
    im1_ref[...] = jnp.zeros(im1_ref.shape, im1_ref.dtype)
    im2_ref[...] = jnp.zeros(im2_ref.shape, im2_ref.dtype)

    w1m = w1_ref[...]          # (C1, KH*KW*C0)
    w2m = w2_ref[...]          # (C2, KH*KW*C1)
    b1 = b1_ref[...]           # (C1, 1) -> broadcasts over lanes
    b2 = b2_ref[...]           # (C2, 1)

    def build_im2col(src, dst_ref, cin):
        # dst[(kh*KW + kw)*cin + c, i] = src[c, i + kh*W + kw]   (for valid i)
        # Pure lane-shifted copies: no sublane repacking, no reshapes.  The
        # convolution is evaluated on the padded H*W grid; only the valid
        # top-left window is ever extracted at the end.
        p = 0
        for kh in range(KH):
            for kw in range(KW):
                d = kh * W + kw
                dst_ref[p * cin:(p + 1) * cin, 0:HW - d] = src[:, d:]
                p += 1

    for bi in range(bb):                       # static unroll over this block
        x = x_ref[bi]                          # (C0, HW), spatial on lanes

        # ---- conv1: single im2col matmul on the padded H*W grid ----
        build_im2col(x, im1_ref, C0)
        y = jnp.dot(w1m, im1_ref[...],
                    preferred_element_type=jnp.float32) + b1        # (C1, HW)

        # ---- MyReLU forward: clamp(min=0) ----
        y = jnp.maximum(y, 0.0)

        # ---- conv2: single im2col matmul ----
        build_im2col(y, im2_ref, C1)
        z = jnp.dot(w2m, im2_ref[...],
                    preferred_element_type=jnp.float32) + b2        # (C2, HW)

        # Compact the valid OH2 x OW2 window (top-left of the padded H x W
        # grid) into the lane-dense (C2, OH2*OW2) output block.
        for oh in range(OH2):
            o_ref[bi, :, oh * OW2:(oh + 1) * OW2] = (
                z[:, oh * W: oh * W + OW2].astype(o_ref.dtype))


def my_model_forward(x_nchw, w1_oihw, b1, w2_oihw, b2, *, images_per_step=1):
    """conv1 -> MyReLU -> conv2 as one fused Pallas kernel.

    x_nchw: (B, 3, H, W) float32; returns (B, 10, H-4, W-4) float32 (NCHW).

    images_per_step=1 keeps a "parallel" batch grid axis (on v7x both
    TensorCores take one image each); images_per_step=B folds the whole batch
    into a single grid step (best on single-core v5e / v6e).
    """
    B, C0, H, W = x_nchw.shape
    C1, _, KH, KW = w1_oihw.shape
    C2 = w2_oihw.shape[0]
    OH1, OW1 = H - KH + 1, W - KW + 1
    OH2, OW2 = OH1 - KH + 1, OW1 - KW + 1
    HW = H * W
    bb = images_per_step
    assert B % bb == 0, "images_per_step must divide the batch"

    # Free reshape (no transpose): NCHW -> (B, C, H*W); spatial on the lanes.
    x = x_nchw.reshape(B, C0, HW)
    # Tiny weight repack (O,I,KH,KW) -> (O, KH*KW*I) matching the in-kernel
    # im2col tap order ((kh, kw) outer, c_in inner).  Negligible (<1 KiB).
    w1m = jnp.transpose(w1_oihw, (0, 2, 3, 1)).reshape(C1, KH * KW * C0)
    w2m = jnp.transpose(w2_oihw, (0, 2, 3, 1)).reshape(C2, KH * KW * C1)
    b1c = b1.reshape(C1, 1)
    b2c = b2.reshape(C2, 1)

    kernel = functools.partial(_fused_conv_relu_conv_kernel,
                               H=H, W=W, KH=KH, KW=KW)

    out = pl.pallas_call(
        kernel,
        out_shape=jax.ShapeDtypeStruct((B, C2, OH2 * OW2), jnp.float32),
        grid_spec=pltpu.PrefetchScalarGridSpec(
            num_scalar_prefetch=0,
            grid=(B // bb,),
            in_specs=[
                pl.BlockSpec((bb, C0, HW), lambda b: (b, 0, 0)),
                # Weights / biases: constant index maps -> fetched once, reused.
                pl.BlockSpec((C1, KH * KW * C0), lambda b: (0, 0)),
                pl.BlockSpec((C1, 1), lambda b: (0, 0)),
                pl.BlockSpec((C2, KH * KW * C1), lambda b: (0, 0)),
                pl.BlockSpec((C2, 1), lambda b: (0, 0)),
            ],
            out_specs=pl.BlockSpec((bb, C2, OH2 * OW2), lambda b: (b, 0, 0)),
            scratch_shapes=[
                pltpu.VMEM((KH * KW * C0, HW), jnp.float32),   # conv1 im2col
                pltpu.VMEM((KH * KW * C1, HW), jnp.float32),   # conv2 im2col
            ],
        ),
        compiler_params=pltpu.CompilerParams(
            dimension_semantics=("parallel",)),
    )(x, w1m, b1c, w2m, b2c)

    # Free reshape back to the PyTorch NCHW output convention.
    return out.reshape(B, C2, OH2, OW2)


def _reference_forward(x_nchw, w1, b1, w2, b2):
    """Pure-JAX reference (lax conv) for a correctness check."""
    dn = ("NCHW", "OIHW", "NCHW")
    y = jax.lax.conv_general_dilated(x_nchw, w1, (1, 1), "VALID",
                                     dimension_numbers=dn)
    y = y + b1.reshape(1, -1, 1, 1)
    y = jnp.maximum(y, 0.0)
    y = jax.lax.conv_general_dilated(y, w2, (1, 1), "VALID",
                                     dimension_numbers=dn)
    return y + b2.reshape(1, -1, 1, 1)


if __name__ == "__main__":
    key = jax.random.PRNGKey(0)
    kx, k1, k2, k3, k4 = jax.random.split(key, 5)

    B, Cin, H, W = 2, 3, 16, 16
    x = jax.random.normal(kx, (B, Cin, H, W), dtype=jnp.float32)

    # Deterministic synthetic parameters matching nn.Conv2d shapes (OIHW).
    w1 = jax.random.normal(k1, (6, 3, 3, 3), dtype=jnp.float32) * 0.1
    b1 = jax.random.normal(k2, (6,), dtype=jnp.float32) * 0.1
    w2 = jax.random.normal(k3, (10, 6, 3, 3), dtype=jnp.float32) * 0.1
    b2 = jax.random.normal(k4, (10,), dtype=jnp.float32) * 0.1

    out = my_model_forward(x, w1, b1, w2, b2)
    out = jax.block_until_ready(out)

    ref = jax.block_until_ready(_reference_forward(x, w1, b1, w2, b2))
    assert out.shape == (B, 10, H - 4, W - 4), out.shape
    assert jnp.allclose(out, ref, atol=1e-4, rtol=1e-4), "mismatch vs reference"

    print("KERNEL_OK")
</pallas_src>

<mosaic_0001>
module attributes {stable_mosaic.version = 11 : i64} {
  func.func @_fused_conv_relu_conv_kernel(%arg0: i32, %arg1: memref<1x3x256xf32, #tpu.memory_space<vmem>>, %arg2: memref<6x27xf32, #tpu.memory_space<vmem>>, %arg3: memref<6x1xf32, #tpu.memory_space<vmem>>, %arg4: memref<10x54xf32, #tpu.memory_space<vmem>>, %arg5: memref<10x1xf32, #tpu.memory_space<vmem>>, %arg6: memref<1x10x144xf32, #tpu.memory_space<vmem>>, %arg7: memref<27x256xf32, #tpu.memory_space<vmem>>, %arg8: memref<54x256xf32, #tpu.memory_space<vmem>>) attributes {dimension_semantics = [#tpu.dimension_semantics<parallel>], iteration_bounds = array<i64: 2>, scalar_prefetch = 0 : i64, scratch_operands = 2 : i64, tpu.core_type = #tpu.core_type<tc>, window_params = [{transform_indices = @transform_0, window_bounds = array<i64: 1, 3, 256>}, {pipeline_mode = #tpu.pipeline_mode<synchronous>, transform_indices = @transform_1, window_bounds = array<i64: 6, 27>}, {pipeline_mode = #tpu.pipeline_mode<synchronous>, transform_indices = @transform_2, window_bounds = array<i64: 6, 1>}, {pipeline_mode = #tpu.pipeline_mode<synchronous>, transform_indices = @transform_3, window_bounds = array<i64: 10, 54>}, {pipeline_mode = #tpu.pipeline_mode<synchronous>, transform_indices = @transform_4, window_bounds = array<i64: 10, 1>}, {transform_indices = @transform_5, window_bounds = array<i64: 1, 10, 144>}]} {
    %cst = arith.constant 0.000000e+00 : f32
    %0 = vector.broadcast %cst : f32 to vector<27x256xf32>
    %c0 = arith.constant 0 : index
    %c0_0 = arith.constant 0 : index
    %1 = vector.load %arg7[%c0, %c0_0] : memref<27x256xf32, #tpu.memory_space<vmem>>, vector<27x256xf32>
    tpu.vector_store %arg7[%c0, %c0_0], %0 {strides = array<i32>} : memref<27x256xf32, #tpu.memory_space<vmem>>, vector<27x256xf32>,
    %cst_1 = arith.constant 0.000000e+00 : f32
    %2 = vector.broadcast %cst_1 : f32 to vector<54x256xf32>
    %c0_2 = arith.constant 0 : index
    %c0_3 = arith.constant 0 : index
    %3 = vector.load %arg8[%c0_2, %c0_3] : memref<54x256xf32, #tpu.memory_space<vmem>>, vector<54x256xf32>
    tpu.vector_store %arg8[%c0_2, %c0_3], %2 {strides = array<i32>} : memref<54x256xf32, #tpu.memory_space<vmem>>, vector<54x256xf32>,
    %c0_4 = arith.constant 0 : index
    %c0_5 = arith.constant 0 : index
    %4 = vector.load %arg2[%c0_4, %c0_5] : memref<6x27xf32, #tpu.memory_space<vmem>>, vector<6x27xf32>
    %c0_6 = arith.constant 0 : index
    %c0_7 = arith.constant 0 : index
    %5 = vector.load %arg4[%c0_6, %c0_7] : memref<10x54xf32, #tpu.memory_space<vmem>>, vector<10x54xf32>
    %c0_8 = arith.constant 0 : index
    %c0_9 = arith.constant 0 : index
    %6 = vector.load %arg3[%c0_8, %c0_9] : memref<6x1xf32, #tpu.memory_space<vmem>>, vector<6x1xf32>
    %c0_10 = arith.constant 0 : index
    %c0_11 = arith.constant 0 : index
    %7 = vector.load %arg5[%c0_10, %c0_11] : memref<10x1xf32, #tpu.memory_space<vmem>>, vector<10x1xf32>
    %c0_12 = arith.constant 0 : index
    %c0_13 = arith.constant 0 : index
    %c0_14 = arith.constant 0 : index
    %8 = vector.load %arg1[%c0_12, %c0_13, %c0_14] : memref<1x3x256xf32, #tpu.memory_space<vmem>>, vector<1x3x256xf32>
    %9 = vector.shape_cast %8 : vector<1x3x256xf32> to vector<3x256xf32>
    %c0_15 = arith.constant 0 : index
    %c0_16 = arith.constant 0 : index
    %10 = vector.load %arg7[%c0_15, %c0_16] : memref<27x256xf32, #tpu.memory_space<vmem>>, vector<3x256xf32>
    tpu.vector_store %arg7[%c0_15, %c0_16], %9 {strides = array<i32>} : memref<27x256xf32, #tpu.memory_space<vmem>>, vector<3x256xf32>,
    %11 = vector.extract_strided_slice %9 {offsets = [0, 1], sizes = [3, 255], strides = [1, 1]} : vector<3x256xf32> to vector<3x255xf32>
    %c3 = arith.constant 3 : index
    %c0_17 = arith.constant 0 : index
    %12 = vector.load %arg7[%c3, %c0_17] : memref<27x256xf32, #tpu.memory_space<vmem>>, vector<3x255xf32>
    tpu.vector_store %arg7[%c3, %c0_17], %11 {strides = array<i32>} : memref<27x256xf32, #tpu.memory_space<vmem>>, vector<3x255xf32>,
    %13 = vector.extract_strided_slice %9 {offsets = [0, 2], sizes = [3, 254], strides = [1, 1]} : vector<3x256xf32> to vector<3x254xf32>
    %c6 = arith.constant 6 : index
    %c0_18 = arith.constant 0 : index
    %14 = vector.load %arg7[%c6, %c0_18] : memref<27x256xf32, #tpu.memory_space<vmem>>, vector<3x254xf32>
    tpu.vector_store %arg7[%c6, %c0_18], %13 {strides = array<i32>} : memref<27x256xf32, #tpu.memory_space<vmem>>, vector<3x254xf32>,
    %15 = vector.extract_strided_slice %9 {offsets = [0, 16], sizes = [3, 240], strides = [1, 1]} : vector<3x256xf32> to vector<3x240xf32>
    %c9 = arith.constant 9 : index
    %c0_19 = arith.constant 0 : index
    %16 = vector.load %arg7[%c9, %c0_19] : memref<27x256xf32, #tpu.memory_space<vmem>>, vector<3x240xf32>
    tpu.vector_store %arg7[%c9, %c0_19], %15 {strides = array<i32>} : memref<27x256xf32, #tpu.memory_space<vmem>>, vector<3x240xf32>,
    %17 = vector.extract_strided_slice %9 {offsets = [0, 17], sizes = [3, 239], strides = [1, 1]} : vector<3x256xf32> to vector<3x239xf32>
    %c12 = arith.constant 12 : index
    %c0_20 = arith.constant 0 : index
    %18 = vector.load %arg7[%c12, %c0_20] : memref<27x256xf32, #tpu.memory_space<vmem>>, vector<3x239xf32>
    tpu.vector_store %arg7[%c12, %c0_20], %17 {strides = array<i32>} : memref<27x256xf32, #tpu.memory_space<vmem>>, vector<3x239xf32>,
    %19 = vector.extract_strided_slice %9 {offsets = [0, 18], sizes = [3, 238], strides = [1, 1]} : vector<3x256xf32> to vector<3x238xf32>
    %c15 = arith.constant 15 : index
    %c0_21 = arith.constant 0 : index
    %20 = vector.load %arg7[%c15, %c0_21] : memref<27x256xf32, #tpu.memory_space<vmem>>, vector<3x238xf32>
    tpu.vector_store %arg7[%c15, %c0_21], %19 {strides = array<i32>} : memref<27x256xf32, #tpu.memory_space<vmem>>, vector<3x238xf32>,
    %21 = vector.extract_strided_slice %9 {offsets = [0, 32], sizes = [3, 224], strides = [1, 1]} : vector<3x256xf32> to vector<3x224xf32>
    %c18 = arith.constant 18 : index
    %c0_22 = arith.constant 0 : index
    %22 = vector.load %arg7[%c18, %c0_22] : memref<27x256xf32, #tpu.memory_space<vmem>>, vector<3x224xf32>
    tpu.vector_store %arg7[%c18, %c0_22], %21 {strides = array<i32>} : memref<27x256xf32, #tpu.memory_space<vmem>>, vector<3x224xf32>,
    %23 = vector.extract_strided_slice %9 {offsets = [0, 33], sizes = [3, 223], strides = [1, 1]} : vector<3x256xf32> to vector<3x223xf32>
    %c21 = arith.constant 21 : index
    %c0_23 = arith.constant 0 : index
    %24 = vector.load %arg7[%c21, %c0_23] : memref<27x256xf32, #tpu.memory_space<vmem>>, vector<3x223xf32>
    tpu.vector_store %arg7[%c21, %c0_23], %23 {strides = array<i32>} : memref<27x256xf32, #tpu.memory_space<vmem>>, vector<3x223xf32>,
    %25 = vector.extract_strided_slice %9 {offsets = [0, 34], sizes = [3, 222], strides = [1, 1]} : vector<3x256xf32> to vector<3x222xf32>
    %c24 = arith.constant 24 : index
    %c0_24 = arith.constant 0 : index
    %26 = vector.load %arg7[%c24, %c0_24] : memref<27x256xf32, #tpu.memory_space<vmem>>, vector<3x222xf32>
    tpu.vector_store %arg7[%c24, %c0_24], %25 {strides = array<i32>} : memref<27x256xf32, #tpu.memory_space<vmem>>, vector<3x222xf32>,
    %c0_25 = arith.constant 0 : index
    %c0_26 = arith.constant 0 : index
    %27 = vector.load %arg7[%c0_25, %c0_26] : memref<27x256xf32, #tpu.memory_space<vmem>>, vector<27x256xf32>
    %cst_27 = arith.constant dense<0.000000e+00> : vector<6x256xf32>
    %28 = tpu.matmul %4, %27, %cst_27 {dimension_numbers = #tpu.dot_dimension_numbers<[1], [0], [0], [1], [0, 0, 1, 1], [], []>} : vector<6x27xf32>, vector<27x256xf32>, vector<6x256xf32> -> vector<6x256xf32>
    %29 = vector.broadcast %6 : vector<6x1xf32> to vector<6x256xf32>
    %30 = arith.addf %28, %29 : vector<6x256xf32>
    %cst_28 = arith.constant 0.000000e+00 : f32
    %31 = vector.broadcast %cst_28 : f32 to vector<6x256xf32>
    %32 = arith.maximumf %30, %31 : vector<6x256xf32>
    %c0_29 = arith.constant 0 : index
    %c0_30 = arith.constant 0 : index
    %33 = vector.load %arg8[%c0_29, %c0_30] : memref<54x256xf32, #tpu.memory_space<vmem>>, vector<6x256xf32>
    tpu.vector_store %arg8[%c0_29, %c0_30], %32 {strides = array<i32>} : memref<54x256xf32, #tpu.memory_space<vmem>>, vector<6x256xf32>,
    %34 = vector.extract_strided_slice %32 {offsets = [0, 1], sizes = [6, 255], strides = [1, 1]} : vector<6x256xf32> to vector<6x255xf32>
    %c6_31 = arith.constant 6 : index
    %c0_32 = arith.constant 0 : index
    %35 = vector.load %arg8[%c6_31, %c0_32] : memref<54x256xf32, #tpu.memory_space<vmem>>, vector<6x255xf32>
    tpu.vector_store %arg8[%c6_31, %c0_32], %34 {strides = array<i32>} : memref<54x256xf32, #tpu.memory_space<vmem>>, vector<6x255xf32>,
    %36 = vector.extract_strided_slice %32 {offsets = [0, 2], sizes = [6, 254], strides = [1, 1]} : vector<6x256xf32> to vector<6x254xf32>
    %c12_33 = arith.constant 12 : index
    %c0_34 = arith.constant 0 : index
    %37 = vector.load %arg8[%c12_33, %c0_34] : memref<54x256xf32, #tpu.memory_space<vmem>>, vector<6x254xf32>
    tpu.vector_store %arg8[%c12_33, %c0_34], %36 {strides = array<i32>} : memref<54x256xf32, #tpu.memory_space<vmem>>, vector<6x254xf32>,
    %38 = vector.extract_strided_slice %32 {offsets = [0, 16], sizes = [6, 240], strides = [1, 1]} : vector<6x256xf32> to vector<6x240xf32>
    %c18_35 = arith.constant 18 : index
    %c0_36 = arith.constant 0 : index
    %39 = vector.load %arg8[%c18_35, %c0_36] : memref<54x256xf32, #tpu.memory_space<vmem>>, vector<6x240xf32>
    tpu.vector_store %arg8[%c18_35, %c0_36], %38 {strides = array<i32>} : memref<54x256xf32, #tpu.memory_space<vmem>>, vector<6x240xf32>,
    %40 = vector.extract_strided_slice %32 {offsets = [0, 17], sizes = [6, 239], strides = [1, 1]} : vector<6x256xf32> to vector<6x239xf32>
    %c24_37 = arith.constant 24 : index
    %c0_38 = arith.constant 0 : index
    %41 = vector.load %arg8[%c24_37, %c0_38] : memref<54x256xf32, #tpu.memory_space<vmem>>, vector<6x239xf32>
    tpu.vector_store %arg8[%c24_37, %c0_38], %40 {strides = array<i32>} : memref<54x256xf32, #tpu.memory_space<vmem>>, vector<6x239xf32>,
    %42 = vector.extract_strided_slice %32 {offsets = [0, 18], sizes = [6, 238], strides = [1, 1]} : vector<6x256xf32> to vector<6x238xf32>
    %c30 = arith.constant 30 : index
    %c0_39 = arith.constant 0 : index
    %43 = vector.load %arg8[%c30, %c0_39] : memref<54x256xf32, #tpu.memory_space<vmem>>, vector<6x238xf32>
    tpu.vector_store %arg8[%c30, %c0_39], %42 {strides = array<i32>} : memref<54x256xf32, #tpu.memory_space<vmem>>, vector<6x238xf32>,
    %44 = vector.extract_strided_slice %32 {offsets = [0, 32], sizes = [6, 224], strides = [1, 1]} : vector<6x256xf32> to vector<6x224xf32>
    %c36 = arith.constant 36 : index
    %c0_40 = arith.constant 0 : index
    %45 = vector.load %arg8[%c36, %c0_40] : memref<54x256xf32, #tpu.memory_space<vmem>>, vector<6x224xf32>
    tpu.vector_store %arg8[%c36, %c0_40], %44 {strides = array<i32>} : memref<54x256xf32, #tpu.memory_space<vmem>>, vector<6x224xf32>,
    %46 = vector.extract_strided_slice %32 {offsets = [0, 33], sizes = [6, 223], strides = [1, 1]} : vector<6x256xf32> to vector<6x223xf32>
    %c42 = arith.constant 42 : index
    %c0_41 = arith.constant 0 : index
    %47 = vector.load %arg8[%c42, %c0_41] : memref<54x256xf32, #tpu.memory_space<vmem>>, vector<6x223xf32>
    tpu.vector_store %arg8[%c42, %c0_41], %46 {strides = array<i32>} : memref<54x256xf32, #tpu.memory_space<vmem>>, vector<6x223xf32>,
    %48 = vector.extract_strided_slice %32 {offsets = [0, 34], sizes = [6, 222], strides = [1, 1]} : vector<6x256xf32> to vector<6x222xf32>
    %c48 = arith.constant 48 : index
    %c0_42 = arith.constant 0 : index
    %49 = vector.load %arg8[%c48, %c0_42] : memref<54x256xf32, #tpu.memory_space<vmem>>, vector<6x222xf32>
    tpu.vector_store %arg8[%c48, %c0_42], %48 {strides = array<i32>} : memref<54x256xf32, #tpu.memory_space<vmem>>, vector<6x222xf32>,
    %c0_43 = arith.constant 0 : index
    %c0_44 = arith.constant 0 : index
    %50 = vector.load %arg8[%c0_43, %c0_44] : memref<54x256xf32, #tpu.memory_space<vmem>>, vector<54x256xf32>
    %cst_45 = arith.constant dense<0.000000e+00> : vector<10x256xf32>
    %51 = tpu.matmul %5, %50, %cst_45 {dimension_numbers = #tpu.dot_dimension_numbers<[1], [0], [0], [1], [0, 0, 1, 1], [], []>} : vector<10x54xf32>, vector<54x256xf32>, vector<10x256xf32> -> vector<10x256xf32>
    %52 = vector.broadcast %7 : vector<10x1xf32> to vector<10x256xf32>
    %53 = arith.addf %51, %52 : vector<10x256xf32>
    %54 = vector.extract_strided_slice %53 {offsets = [0, 0], sizes = [10, 12], strides = [1, 1]} : vector<10x256xf32> to vector<10x12xf32>
    %c0_46 = arith.constant 0 : index
    %c0_47 = arith.constant 0 : index
    %c0_48 = arith.constant 0 : index
    %55 = vector.load %arg6[%c0_46, %c0_47, %c0_48] : memref<1x10x144xf32, #tpu.memory_space<vmem>>, vector<1x10x12xf32>
    %56 = vector.shape_cast %55 : vector<1x10x12xf32> to vector<10x12xf32>
    %57 = vector.shape_cast %54 : vector<10x12xf32> to vector<1x10x12xf32>
    tpu.vector_store %arg6[%c0_46, %c0_47, %c0_48], %57 {strides = array<i32>} : memref<1x10x144xf32, #tpu.memory_space<vmem>>, vector<1x10x12xf32>,
    %58 = vector.extract_strided_slice %53 {offsets = [0, 16], sizes = [10, 12], strides = [1, 1]} : vector<10x256xf32> to vector<10x12xf32>
    %c0_49 = arith.constant 0 : index
    %c0_50 = arith.constant 0 : index
    %c12_51 = arith.constant 12 : index
    %59 = vector.load %arg6[%c0_49, %c0_50, %c12_51] : memref<1x10x144xf32, #tpu.memory_space<vmem>>, vector<1x10x12xf32>
    %60 = vector.shape_cast %59 : vector<1x10x12xf32> to vector<10x12xf32>
    %61 = vector.shape_cast %58 : vector<10x12xf32> to vector<1x10x12xf32>
    tpu.vector_store %arg6[%c0_49, %c0_50, %c12_51], %61 {strides = array<i32>} : memref<1x10x144xf32, #tpu.memory_space<vmem>>, vector<1x10x12xf32>,
    %62 = vector.extract_strided_slice %53 {offsets = [0, 32], sizes = [10, 12], strides = [1, 1]} : vector<10x256xf32> to vector<10x12xf32>
    %c0_52 = arith.constant 0 : index
    %c0_53 = arith.constant 0 : index
    %c24_54 = arith.constant 24 : index
    %63 = vector.load %arg6[%c0_52, %c0_53, %c24_54] : memref<1x10x144xf32, #tpu.memory_space<vmem>>, vector<1x10x12xf32>
    %64 = vector.shape_cast %63 : vector<1x10x12xf32> to vector<10x12xf32>
    %65 = vector.shape_cast %62 : vector<10x12xf32> to vector<1x10x12xf32>
    tpu.vector_store %arg6[%c0_52, %c0_53, %c24_54], %65 {strides = array<i32>} : memref<1x10x144xf32, #tpu.memory_space<vmem>>, vector<1x10x12xf32>,
    %66 = vector.extract_strided_slice %53 {offsets = [0, 48], sizes = [10, 12], strides = [1, 1]} : vector<10x256xf32> to vector<10x12xf32>
    %c0_55 = arith.constant 0 : index
    %c0_56 = arith.constant 0 : index
    %c36_57 = arith.constant 36 : index
    %67 = vector.load %arg6[%c0_55, %c0_56, %c36_57] : memref<1x10x144xf32, #tpu.memory_space<vmem>>, vector<1x10x12xf32>
    %68 = vector.shape_cast %67 : vector<1x10x12xf32> to vector<10x12xf32>
    %69 = vector.shape_cast %66 : vector<10x12xf32> to vector<1x10x12xf32>
    tpu.vector_store %arg6[%c0_55, %c0_56, %c36_57], %69 {strides = array<i32>} : memref<1x10x144xf32, #tpu.memory_space<vmem>>, vector<1x10x12xf32>,
    %70 = vector.extract_strided_slice %53 {offsets = [0, 64], sizes = [10, 12], strides = [1, 1]} : vector<10x256xf32> to vector<10x12xf32>
    %c0_58 = arith.constant 0 : index
    %c0_59 = arith.constant 0 : index
    %c48_60 = arith.constant 48 : index
    %71 = vector.load %arg6[%c0_58, %c0_59, %c48_60] : memref<1x10x144xf32, #tpu.memory_space<vmem>>, vector<1x10x12xf32>
    %72 = vector.shape_cast %71 : vector<1x10x12xf32> to vector<10x12xf32>
    %73 = vector.shape_cast %70 : vector<10x12xf32> to vector<1x10x12xf32>
    tpu.vector_store %arg6[%c0_58, %c0_59, %c48_60], %73 {strides = array<i32>} : memref<1x10x144xf32, #tpu.memory_space<vmem>>, vector<1x10x12xf32>,
    %74 = vector.extract_strided_slice %53 {offsets = [0, 80], sizes = [10, 12], strides = [1, 1]} : vector<10x256xf32> to vector<10x12xf32>
    %c0_61 = arith.constant 0 : index
    %c0_62 = arith.constant 0 : index
    %c60 = arith.constant 60 : index
    %75 = vector.load %arg6[%c0_61, %c0_62, %c60] : memref<1x10x144xf32, #tpu.memory_space<vmem>>, vector<1x10x12xf32>
    %76 = vector.shape_cast %75 : vector<1x10x12xf32> to vector<10x12xf32>
    %77 = vector.shape_cast %74 : vector<10x12xf32> to vector<1x10x12xf32>
    tpu.vector_store %arg6[%c0_61, %c0_62, %c60], %77 {strides = array<i32>} : memref<1x10x144xf32, #tpu.memory_space<vmem>>, vector<1x10x12xf32>,
    %78 = vector.extract_strided_slice %53 {offsets = [0, 96], sizes = [10, 12], strides = [1, 1]} : vector<10x256xf32> to vector<10x12xf32>
    %c0_63 = arith.constant 0 : index
    %c0_64 = arith.constant 0 : index
    %c72 = arith.constant 72 : index
    %79 = vector.load %arg6[%c0_63, %c0_64, %c72] : memref<1x10x144xf32, #tpu.memory_space<vmem>>, vector<1x10x12xf32>
    %80 = vector.shape_cast %79 : vector<1x10x12xf32> to vector<10x12xf32>
    %81 = vector.shape_cast %78 : vector<10x12xf32> to vector<1x10x12xf32>
    tpu.vector_store %arg6[%c0_63, %c0_64, %c72], %81 {strides = array<i32>} : memref<1x10x144xf32, #tpu.memory_space<vmem>>, vector<1x10x12xf32>,
    %82 = vector.extract_strided_slice %53 {offsets = [0, 112], sizes = [10, 12], strides = [1, 1]} : vector<10x256xf32> to vector<10x12xf32>
    %c0_65 = arith.constant 0 : index
    %c0_66 = arith.constant 0 : index
    %c84 = arith.constant 84 : index
    %83 = vector.load %arg6[%c0_65, %c0_66, %c84] : memref<1x10x144xf32, #tpu.memory_space<vmem>>, vector<1x10x12xf32>
    %84 = vector.shape_cast %83 : vector<1x10x12xf32> to vector<10x12xf32>
    %85 = vector.shape_cast %82 : vector<10x12xf32> to vector<1x10x12xf32>
    tpu.vector_store %arg6[%c0_65, %c0_66, %c84], %85 {strides = array<i32>} : memref<1x10x144xf32, #tpu.memory_space<vmem>>, vector<1x10x12xf32>,
    %86 = vector.extract_strided_slice %53 {offsets = [0, 128], sizes = [10, 12], strides = [1, 1]} : vector<10x256xf32> to vector<10x12xf32>
    %c0_67 = arith.constant 0 : index
    %c0_68 = arith.constant 0 : index
    %c96 = arith.constant 96 : index
    %87 = vector.load %arg6[%c0_67, %c0_68, %c96] : memref<1x10x144xf32, #tpu.memory_space<vmem>>, vector<1x10x12xf32>
    %88 = vector.shape_cast %87 : vector<1x10x12xf32> to vector<10x12xf32>
    %89 = vector.shape_cast %86 : vector<10x12xf32> to vector<1x10x12xf32>
    tpu.vector_store %arg6[%c0_67, %c0_68, %c96], %89 {strides = array<i32>} : memref<1x10x144xf32, #tpu.memory_space<vmem>>, vector<1x10x12xf32>,
    %90 = vector.extract_strided_slice %53 {offsets = [0, 144], sizes = [10, 12], strides = [1, 1]} : vector<10x256xf32> to vector<10x12xf32>
    %c0_69 = arith.constant 0 : index
    %c0_70 = arith.constant 0 : index
    %c108 = arith.constant 108 : index
    %91 = vector.load %arg6[%c0_69, %c0_70, %c108] : memref<1x10x144xf32, #tpu.memory_space<vmem>>, vector<1x10x12xf32>
    %92 = vector.shape_cast %91 : vector<1x10x12xf32> to vector<10x12xf32>
    %93 = vector.shape_cast %90 : vector<10x12xf32> to vector<1x10x12xf32>
    tpu.vector_store %arg6[%c0_69, %c0_70, %c108], %93 {strides = array<i32>} : memref<1x10x144xf32, #tpu.memory_space<vmem>>, vector<1x10x12xf32>,
    %94 = vector.extract_strided_slice %53 {offsets = [0, 160], sizes = [10, 12], strides = [1, 1]} : vector<10x256xf32> to vector<10x12xf32>
    %c0_71 = arith.constant 0 : index
    %c0_72 = arith.constant 0 : index
    %c120 = arith.constant 120 : index
    %95 = vector.load %arg6[%c0_71, %c0_72, %c120] : memref<1x10x144xf32, #tpu.memory_space<vmem>>, vector<1x10x12xf32>
    %96 = vector.shape_cast %95 : vector<1x10x12xf32> to vector<10x12xf32>
    %97 = vector.shape_cast %94 : vector<10x12xf32> to vector<1x10x12xf32>
    tpu.vector_store %arg6[%c0_71, %c0_72, %c120], %97 {strides = array<i32>} : memref<1x10x144xf32, #tpu.memory_space<vmem>>, vector<1x10x12xf32>,
    %98 = vector.extract_strided_slice %53 {offsets = [0, 176], sizes = [10, 12], strides = [1, 1]} : vector<10x256xf32> to vector<10x12xf32>
    %c0_73 = arith.constant 0 : index
    %c0_74 = arith.constant 0 : index
    %c132 = arith.constant 132 : index
    %99 = vector.load %arg6[%c0_73, %c0_74, %c132] : memref<1x10x144xf32, #tpu.memory_space<vmem>>, vector<1x10x12xf32>
    %100 = vector.shape_cast %99 : vector<1x10x12xf32> to vector<10x12xf32>
    %101 = vector.shape_cast %98 : vector<10x12xf32> to vector<1x10x12xf32>
    tpu.vector_store %arg6[%c0_73, %c0_74, %c132], %101 {strides = array<i32>} : memref<1x10x144xf32, #tpu.memory_space<vmem>>, vector<1x10x12xf32>,
    return
  }
  func.func @transform_0(%arg0: i32) -> (i32, i32, i32) {
    %c0_i32 = arith.constant 0 : i32
    %c0_i32_0 = arith.constant 0 : i32
    %c0_i32_1 = arith.constant 0 : i32
    return %arg0, %c0_i32, %c0_i32_0 : i32, i32, i32
  }
  func.func @transform_1(%arg0: i32) -> (i32, i32) {
    %c0_i32 = arith.constant 0 : i32
    %c0_i32_0 = arith.constant 0 : i32
    %c0_i32_1 = arith.constant 0 : i32
    return %c0_i32, %c0_i32_0 : i32, i32
  }
  func.func @transform_2(%arg0: i32) -> (i32, i32) {
    %c0_i32 = arith.constant 0 : i32
    %c0_i32_0 = arith.constant 0 : i32
    %c0_i32_1 = arith.constant 0 : i32
    return %c0_i32, %c0_i32_0 : i32, i32
  }
  func.func @transform_3(%arg0: i32) -> (i32, i32) {
    %c0_i32 = arith.constant 0 : i32
    %c0_i32_0 = arith.constant 0 : i32
    %c0_i32_1 = arith.constant 0 : i32
    return %c0_i32, %c0_i32_0 : i32, i32
  }
  func.func @transform_4(%arg0: i32) -> (i32, i32) {
    %c0_i32 = arith.constant 0 : i32
    %c0_i32_0 = arith.constant 0 : i32
    %c0_i32_1 = arith.constant 0 : i32
    return %c0_i32, %c0_i32_0 : i32, i32
  }
  func.func @transform_5(%arg0: i32) -> (i32, i32, i32) {
    %c0_i32 = arith.constant 0 : i32
    %c0_i32_0 = arith.constant 0 : i32
    %c0_i32_1 = arith.constant 0 : i32
    return %arg0, %c0_i32, %c0_i32_0 : i32, i32, i32
  }
}

</mosaic_0001>

<llo_original>
// kernel: tpu_custom_call.1
$region0: #{tpu_custom_call.1}
  #allocation0 [shape = 'u32[]', space=smem, size = 0x4, offset = 0x4, fixed_abs, tag = 'smem constant byte address 0x4 - core index']
  #allocation1 [shape = 'u32[144,128]{1,0:T(1,128)}', space=vmem, size = 0x12000, scoped, tag = 'internal scratch']
  #allocation2 [shape = 'f32[27,256]{1,0:T(8,128)}', space=vmem, size = 0x8000, scoped, tag = 'scratch operand']
  #allocation3 [shape = 'f32[54,256]{1,0:T(8,128)}', space=vmem, size = 0xe000, scoped, tag = 'scratch operand']
  %s0 = inlined_call_operand.vmem [shape: f32[2,3,256], index: 0, kind: input, shape index: {}]
  %s1 = inlined_call_operand.vmem [shape: f32[6,27], index: 1, kind: input, shape index: {}]
  %s2 = inlined_call_operand.vmem [shape: f32[6,1], index: 2, kind: input, shape index: {}]
  %s3 = inlined_call_operand.vmem [shape: f32[10,54], index: 3, kind: input, shape index: {}]
  %s4 = inlined_call_operand.vmem [shape: f32[10,1], index: 4, kind: input, shape index: {}]
  %s5 = inlined_call_operand.vmem [shape: f32[2,10,144], index: 5, kind: output, shape index: {}]
  %s6 = sld [smem:[#allocation0]]
  $region53: #{tpu_custom_call.1} parent=0
    _
  %s8 = ssub.s32 1, %s6
  %s9 = scalar_select 0, %s8, %s6
  loop: start=0, step=1, limit=4
  $region2: #{tpu_custom_call.1} parent=0 // loop_pre_header
    _
  $region3: #{tpu_custom_call.1} parent=0 // loop_header
    %s11 = sphi 0, %s15
    %p12 = scmp.ge.s32.totalorder %s11, 4
    %s21 = sphi 0, %s23
    %s24 = sphi 0, %s21
    %s25 = sphi 0, %s24
    %s41 = sphi 0, %s25
    %s45 = sphi 0, %s45
    %s47 = sphi 0, %s45
    %s48 = sphi 0, %s47
    %s62 = sphi 0, %s48
    %s66 = sphi 0, %s66
    %s68 = sphi 0, %s66
    %s69 = sphi 0, %s68
    %s83 = sphi 0, %s69
    %s87 = sphi 0, %s87
    %s89 = sphi 0, %s87
    %s90 = sphi 0, %s89
    %s104 = sphi 0, %s90
    %s108 = sphi 0, %s108
    %s110 = sphi 0, %s108
    %s111 = sphi 0, %s110
    %s125 = sphi 0, %s111
    %s131 = sphi 0, %s133
    %s134 = sphi 0, %s131
    %s135 = sphi 0, %s134
    %s151 = sphi 0, %s135
  $region4: #{tpu_custom_call.1} parent=0 // loop_header_branch
    %14 = sbr.rel (%p12) target = $region8
  $region5: #{tpu_custom_call.1} parent=0 // loop_body
    %s16 = ssub.s32 %s11, 1
    %s17 = ssub.s32 %s11, 2
    %s18 = sadd.s32 %s11, 1
    %s19 = ssub.s32 %s11, %s18
    %p20 = scmp.eq.s32.totalorder %s19, 0
    %s22 = sadd.s32 %s21, 1
    %s23 = scalar_select %p20, %s21, %s22
    %p26 = pneg %p20
    %p27 = scmp.eq.s32.totalorder %s11, 1
    %p28 = por %p26, %p27
    %p29 = scmp.ne.s32.totalorder %s21, %s24
    %p30 = scmp.eq.s32.totalorder %s11, 0
    %p31 = por %p29, %p30
    %p32 = scmp.ne.s32.totalorder %s21, %s24
    %p33 = scmp.eq.s32.totalorder %s16, 1
    %p34 = por %p32, %p33
    %p35 = scmp.ne.s32.totalorder %s24, %s25
    %p36 = scmp.eq.s32.totalorder %s16, 0
    %p37 = por %p35, %p36
    %p38 = scmp.ne.s32.totalorder %s24, %s25
    %p39 = scmp.eq.s32.totalorder %s17, 1
    %p40 = por %p38, %p39
    %p42 = scmp.ne.s32.totalorder %s25, %s41
    %p43 = scmp.eq.s32.totalorder %s17, 0
    %p44 = por %p42, %p43
    %s46 = sadd.s32 %s45, 1
    %p49 = scmp.eq.s32.totalorder %s11, 1
    %p50 = scmp.ne.s32.totalorder %s45, %s47
    %p51 = scmp.eq.s32.totalorder %s11, 0
    %p52 = por %p50, %p51
    %p53 = scmp.ne.s32.totalorder %s45, %s47
    %p54 = scmp.eq.s32.totalorder %s16, 1
    %p55 = por %p53, %p54
    %p56 = scmp.ne.s32.totalorder %s47, %s48
    %p57 = scmp.eq.s32.totalorder %s16, 0
    %p58 = por %p56, %p57
    %p59 = scmp.ne.s32.totalorder %s47, %s48
    %p60 = scmp.eq.s32.totalorder %s17, 1
    %p61 = por %p59, %p60
    %p63 = scmp.ne.s32.totalorder %s48, %s62
    %p64 = scmp.eq.s32.totalorder %s17, 0
    %p65 = por %p63, %p64
    %s67 = sadd.s32 %s66, 1
    %p70 = scmp.eq.s32.totalorder %s11, 1
    %p71 = scmp.ne.s32.totalorder %s66, %s68
    %p72 = scmp.eq.s32.totalorder %s11, 0
    %p73 = por %p71, %p72
    %p74 = scmp.ne.s32.totalorder %s66, %s68
    %p75 = scmp.eq.s32.totalorder %s16, 1
    %p76 = por %p74, %p75
    %p77 = scmp.ne.s32.totalorder %s68, %s69
    %p78 = scmp.eq.s32.totalorder %s16, 0
    %p79 = por %p77, %p78
    %p80 = scmp.ne.s32.totalorder %s68, %s69
    %p81 = scmp.eq.s32.totalorder %s17, 1
    %p82 = por %p80, %p81
    %p84 = scmp.ne.s32.totalorder %s69, %s83
    %p85 = scmp.eq.s32.totalorder %s17, 0
    %p86 = por %p84, %p85
    %s88 = sadd.s32 %s87, 1
    %p91 = scmp.eq.s32.totalorder %s11, 1
    %p92 = scmp.ne.s32.totalorder %s87, %s89
    %p93 = scmp.eq.s32.totalorder %s11, 0
    %p94 = por %p92, %p93
    %p95 = scmp.ne.s32.totalorder %s87, %s89
    %p96 = scmp.eq.s32.totalorder %s16, 1
    %p97 = por %p95, %p96
    %p98 = scmp.ne.s32.totalorder %s89, %s90
    %p99 = scmp.eq.s32.totalorder %s16, 0
    %p100 = por %p98, %p99
    %p101 = scmp.ne.s32.totalorder %s89, %s90
    %p102 = scmp.eq.s32.totalorder %s17, 1
    %p103 = por %p101, %p102
    %p105 = scmp.ne.s32.totalorder %s90, %s104
    %p106 = scmp.eq.s32.totalorder %s17, 0
    %p107 = por %p105, %p106
    %s109 = sadd.s32 %s108, 1
    %p112 = scmp.eq.s32.totalorder %s11, 1
    %p113 = scmp.ne.s32.totalorder %s108, %s110
    %p114 = scmp.eq.s32.totalorder %s11, 0
    %p115 = por %p113, %p114
    %p116 = scmp.ne.s32.totalorder %s108, %s110
    %p117 = scmp.eq.s32.totalorder %s16, 1
    %p118 = por %p116, %p117
    %p119 = scmp.ne.s32.totalorder %s110, %s111
    %p120 = scmp.eq.s32.totalorder %s16, 0
    %p121 = por %p119, %p120
    %p122 = scmp.ne.s32.totalorder %s110, %s111
    %p123 = scmp.eq.s32.totalorder %s17, 1
    %p124 = por %p122, %p123
    %p126 = scmp.ne.s32.totalorder %s111, %s125
    %p127 = scmp.eq.s32.totalorder %s17, 0
    %p128 = por %p126, %p127
    %s129 = ssub.s32 %s11, %s18
    %p130 = scmp.eq.s32.totalorder %s129, 0
    %s132 = sadd.s32 %s131, 1
    %s133 = scalar_select %p130, %s131, %s132
    %p136 = pneg %p130
    %p137 = scmp.eq.s32.totalorder %s11, 1
    %p138 = por %p136, %p137
    %p139 = scmp.ne.s32.totalorder %s131, %s134
    %p140 = scmp.eq.s32.totalorder %s11, 0
    %p141 = por %p139, %p140
    %p142 = scmp.ne.s32.totalorder %s131, %s134
    %p143 = scmp.eq.s32.totalorder %s16, 1
    %p144 = por %p142, %p143
    %p145 = scmp.ne.s32.totalorder %s134, %s135
    %p146 = scmp.eq.s32.totalorder %s16, 0
    %p147 = por %p145, %p146
    %p148 = scmp.ne.s32.totalorder %s134, %s135
    %p149 = scmp.eq.s32.totalorder %s17, 1
    %p150 = por %p148, %p149
    %p152 = scmp.ne.s32.totalorder %s135, %s151
    %p153 = scmp.eq.s32.totalorder %s17, 0
    %p154 = por %p152, %p153
    %p155 = scmp.le.s32.totalorder 1, %s11
    %p156 = scmp.lt.s32.totalorder %s11, 3
    %p157 = pnand %p155, %p156
    %p158 = pneg %p157
    // Predicated region
    $region9: #{tpu_custom_call.1} parent=5 // pred_check
      _
    $region10: #{tpu_custom_call.1} parent=5 // pred_check_branch
      %160 = sbr.rel (%p157) target = $region12
    $region11: #{tpu_custom_call.1} parent=5 // pred_region
      %s161 = ssub.s32 %s11, 1
      // Predicated region
      $region13: #{tpu_custom_call.1} parent=11 // pred_check
        %p162 = pneg %p58
      $region14: #{tpu_custom_call.1} parent=11 // pred_check_branch
        %164 = sbr.rel (%p162) target = $region16
      $region15: #{tpu_custom_call.1} parent=11 // pred_region
        _
      $region16: #{tpu_custom_call.1} parent=11 // pred_fallthru
        _
      // Predicated region
      $region17: #{tpu_custom_call.1} parent=11 // pred_check
        %p165 = pneg %p79
      $region18: #{tpu_custom_call.1} parent=11 // pred_check_branch
        %167 = sbr.rel (%p165) target = $region20
      $region19: #{tpu_custom_call.1} parent=11 // pred_region
        _
      $region20: #{tpu_custom_call.1} parent=11 // pred_fallthru
        _
      // Predicated region
      $region21: #{tpu_custom_call.1} parent=11 // pred_check
        %p168 = pneg %p100
      $region22: #{tpu_custom_call.1} parent=11 // pred_check_branch
        %170 = sbr.rel (%p168) target = $region24
      $region23: #{tpu_custom_call.1} parent=11 // pred_region
        _
      $region24: #{tpu_custom_call.1} parent=11 // pred_fallthru
        _
      // Predicated region
      $region25: #{tpu_custom_call.1} parent=11 // pred_check
        %p171 = pneg %p121
      $region26: #{tpu_custom_call.1} parent=11 // pred_check_branch
        %173 = sbr.rel (%p171) target = $region28
      $region27: #{tpu_custom_call.1} parent=11 // pred_region
        _
      $region28: #{tpu_custom_call.1} parent=11 // pred_fallthru
        _
    $region12: #{tpu_custom_call.1} parent=5 // pred_fallthru
      _
    %p174 = scmp.lt.s32.totalorder %s11, 2
    // Predicated region
    $region29: #{tpu_custom_call.1} parent=5 // pred_check
      %p175 = pneg %p174
    $region30: #{tpu_custom_call.1} parent=5 // pred_check_branch
      %177 = sbr.rel (%p175) target = $region32
    $region31: #{tpu_custom_call.1} parent=5 // pred_region
      // Predicated region
      $region33: #{tpu_custom_call.1} parent=31 // pred_check
        %p178 = pneg %p31
      $region34: #{tpu_custom_call.1} parent=31 // pred_check_branch
        %180 = sbr.rel (%p178) target = $region36
      $region35: #{tpu_custom_call.1} parent=31 // pred_region
        %p181 = scmp.lt.s32.totalorder %s11, 1
        %s182 = scalar_select %p181, %s11, 1
        %s183 = smul.addr %s182, 2
        %s184 = smul.addr %s183, 4
        %s185 = scalar_lea.vmem %s0, %s184
      $region36: #{tpu_custom_call.1} parent=31 // pred_fallthru
        _
    $region32: #{tpu_custom_call.1} parent=5 // pred_fallthru
      _
    %p186 = scmp.le.s32.totalorder 1, %s11
    %p187 = scmp.lt.s32.totalorder %s11, 3
    %p188 = pnand %p186, %p187
    %p189 = pneg %p188
    // Predicated region
    $region37: #{tpu_custom_call.1} parent=5 // pred_check
      _
    $region38: #{tpu_custom_call.1} parent=5 // pred_check_branch
      %191 = sbr.rel (%p188) target = $region40
    $region39: #{tpu_custom_call.1} parent=5 // pred_region
      %s192 = ssub.s32 %s11, 1
      %p193 = scmp.lt.s32.totalorder %s16, 1
      %s194 = scalar_select %p193, %s16, 1
      %s195 = smul.addr %s194, 2
      %s196 = smul.addr %s195, 4
      %s197 = scalar_lea.vmem %s0, %s196
      %p198 = pneg %p37
      %p199 = pneg %p34
      %p200 = pneg %p58
      %p201 = pneg %p55
      %p202 = pneg %p79
      %p203 = pneg %p76
      %p204 = pneg %p100
      %p205 = pneg %p97
      %p206 = pneg %p121
      %p207 = pneg %p118
      %p208 = pneg %p147
      %p209 = pneg %p144
      %p210 = scmp.lt.s32.totalorder %s16, 1
      %s211 = scalar_select %p210, %s16, 1
      %s212 = smul.addr %s211, 4
      %s213 = smul.addr %s212, 8
      %s214 = scalar_lea.vmem %s5, %s213
      %p215 = scmp.lt.s32.totalorder %s16, 1
      %s216 = scalar_select %p215, %s16, 1
      %s217 = smul.addr %s216, 2
      %s218 = smul.addr %s217, 4
      %s219 = scalar_lea.vmem %s0, %s218
      %p220 = scmp.lt.s32.totalorder %s16, 1
      %s221 = scalar_select %p220, %s16, 1
      %s222 = smul.addr %s221, 4
      %s223 = smul.addr %s222, 8
      %s224 = scalar_lea.vmem %s5, %s223
      %225 = vst [vmem:[#allocation2] sm:$0xff] 0.0
      %226 = vst [vmem:[#allocation2 + $0x8] sm:$0xff] 0.0
      %227 = vst [vmem:[#allocation2 + $0x10] sm:$0xff] 0.0
      %228 = vst [vmem:[#allocation2 + $0x18] sm:$0xff] 0.0
      %229 = vst [vmem:[#allocation2 + $0x20] sm:$0xff] 0.0
      %230 = vst [vmem:[#allocation2 + $0x28] sm:$0xff] 0.0
      %231 = vst [vmem:[#allocation2 + $0x30] sm:$0x7] 0.0
      %232 = vst [vmem:[#allocation2 + $0x38] sm:$0x7] 0.0
      %233 = vst [vmem:[#allocation3] sm:$0xff] 0.0
      %234 = vst [vmem:[#allocation3 + $0x8] sm:$0xff] 0.0
      %235 = vst [vmem:[#allocation3 + $0x10] sm:$0xff] 0.0
      %236 = vst [vmem:[#allocation3 + $0x18] sm:$0xff] 0.0
      %237 = vst [vmem:[#allocation3 + $0x20] sm:$0xff] 0.0
      %238 = vst [vmem:[#allocation3 + $0x28] sm:$0xff] 0.0
      %239 = vst [vmem:[#allocation3 + $0x30] sm:$0xff] 0.0
      %240 = vst [vmem:[#allocation3 + $0x38] sm:$0xff] 0.0
      %241 = vst [vmem:[#allocation3 + $0x40] sm:$0xff] 0.0
      %242 = vst [vmem:[#allocation3 + $0x48] sm:$0xff] 0.0
      %243 = vst [vmem:[#allocation3 + $0x50] sm:$0xff] 0.0
      %244 = vst [vmem:[#allocation3 + $0x58] sm:$0xff] 0.0
      %245 = vst [vmem:[#allocation3 + $0x60] sm:$0x3f] 0.0
      %246 = vst [vmem:[#allocation3 + $0x68] sm:$0x3f] 0.0
      %v247 = vld [vmem:[%s1] sm:$0x3f]
      %v248 = vld [vmem:[%s3] sm:$0xff]
      %v249 = vld [vmem:[%s3 + $0x8] sm:$0x3]
      %v250 = vld [vmem:[%s2] sm:$0x3f]
      %v251 = vld [vmem:[%s4] sm:$0xff]
      %v252 = vld [vmem:[%s4 + $0x8] sm:$0x3]
      %v253 = vld [vmem:[%s219] sm:$0x77]
      %v255 = vcombine.high %v253, %v253
      %257 = vst [vmem:[#allocation2] sm:$0x7] %v253
      %258 = vst [vmem:[#allocation2 + $0x8] sm:$0x7] %v255
      %v259 = vrot.slane %v253, 5
      %v260 = vrot.slane %v255, 5
      %261 = vrot.lane.b32.xlu0 %v259, 127
      %v262 = vpop.permute.xlu0 %261
      %263 = vrot.lane.b32.xlu0 %v260, 127
      %v264 = vpop.permute.xlu0 %263
      %vm265 = vcmask 1039360
      %v266 = vsel %vm265, %v262, %v264
      %269 = vst [vmem:[#allocation2] sm:$0x38] %v266
      %vm270 = vcmask 1037315
      %271 = vst.msk [vmem:[#allocation2 + $0x8] sm:$0x38] %vm270, %v264
      %v272 = vrot.slane %v253, 2
      %v273 = vrot.slane %v255, 2
      %274 = vrot.lane.b32.xlu0 %v272, 126
      %v275 = vpop.permute.xlu0 %274
      %276 = vrot.lane.b32.xlu0 %v273, 126
      %v277 = vpop.permute.xlu0 %276
      %vm278 = vcmask 1031168
      %v279 = vsel %vm278, %v275, %v277
      %282 = vst [vmem:[#allocation2] sm:$0xc0] %v279
      %vm283 = vcmask 1031174
      %284 = vst.msk [vmem:[#allocation2 + $0x8] sm:$0xc0] %vm283, %v277
      %285 = vst [vmem:[#allocation2 + $0x10] sm:$0x1] %v279
      %vm286 = vcmask 1024000
      %287 = vst.msk [vmem:[#allocation2 + $0x18] sm:$0x1] %vm286, %v277
      %v288 = vrot.slane %v253, 7
      %v289 = vrot.slane %v255, 7
      %290 = vrot.lane.b32.xlu0 %v288, 112
      %v291 = vpop.permute.xlu0 %290
      %292 = vrot.lane.b32.xlu0 %v289, 112
      %v293 = vpop.permute.xlu0 %292
      %vm294 = vcmask 916480
      %v295 = vsel %vm294, %v291, %v293
      %298 = vst [vmem:[#allocation2 + $0x10] sm:$0xe] %v295
      %vm299 = vcmask 912385
      %300 = vst.msk [vmem:[#allocation2 + $0x18] sm:$0xe] %vm299, %v293
      %v301 = vcombine.low %v253, %v253
      %302 = vrot.lane.b32.xlu0 %v301, 111
      %v303 = vpop.permute.xlu0 %302
      %304 = vrot.lane.b32.xlu0 %v253, 111
      %v305 = vpop.permute.xlu0 %304
      %vm306 = vcmask 908288
      %v307 = vsel %vm306, %v303, %v305
      %310 = vst [vmem:[#allocation2 + $0x10] sm:$0x70] %v307
      %vm311 = vcmask 907268
      %312 = vst.msk [vmem:[#allocation2 + $0x18] sm:$0x70] %vm311, %v305
      %v313 = vrot.slane %v253, 1
      %v314 = vrot.slane %v255, 1
      %315 = vrot.lane.b32.xlu0 %v313, 110
      %v316 = vpop.permute.xlu0 %315
      %317 = vrot.lane.b32.xlu0 %v314, 110
      %v318 = vpop.permute.xlu0 %317
      %vm319 = vcmask 900096
      %v320 = vsel %vm319, %v316, %v318
      %323 = vst [vmem:[#allocation2 + $0x10] sm:$0x80] %v320
      %vm324 = vcmask 900103
      %325 = vst.msk [vmem:[#allocation2 + $0x18] sm:$0x80] %vm324, %v318
      %326 = vst [vmem:[#allocation2 + $0x20] sm:$0x3] %v320
      %vm327 = vcmask 893952
      %328 = vst.msk [vmem:[#allocation2 + $0x28] sm:$0x3] %vm327, %v318
      %v329 = vrot.slane %v253, 6
      %v330 = vrot.slane %v255, 6
      %331 = vrot.lane.b32.xlu0 %v329, 96
      %v332 = vpop.permute.xlu0 %331
      %333 = vrot.lane.b32.xlu0 %v330, 96
      %v334 = vpop.permute.xlu0 %333
      %vm335 = vcmask 785408
      %v336 = vsel %vm335, %v332, %v334
      %339 = vst [vmem:[#allocation2 + $0x20] sm:$0x1c] %v336
      %vm340 = vcmask 782338
      %341 = vst.msk [vmem:[#allocation2 + $0x28] sm:$0x1c] %vm340, %v334
      %v342 = vrot.slane %v253, 3
      %v343 = vrot.slane %v255, 3
      %344 = vrot.lane.b32.xlu0 %v342, 95
      %v345 = vpop.permute.xlu0 %344
      %346 = vrot.lane.b32.xlu0 %v343, 95
      %v347 = vpop.permute.xlu0 %346
      %vm348 = vcmask 777216
      %v349 = vsel %vm348, %v345, %v347
      %352 = vst [vmem:[#allocation2 + $0x20] sm:$0xe0] %v349
      %vm353 = vcmask 777221
      %354 = vst.msk [vmem:[#allocation2 + $0x28] sm:$0xe0] %vm353, %v347
      %355 = vrot.lane.b32.xlu0 %v253, 94
      %v356 = vpop.permute.xlu0 %355
      %357 = vrot.lane.b32.xlu0 %v255, 94
      %v358 = vpop.permute.xlu0 %357
      %vm359 = vcmask 769024
      %v360 = vsel %vm359, %v356, %v358
      %363 = vst [vmem:[#allocation2 + $0x30] sm:$0x7] %v360
      %vm364 = vcmask 763904
      %365 = vst.msk [vmem:[#allocation2 + $0x38] sm:$0x7] %vm364, %v358
      %v366 = vld [vmem:[#allocation2] sm:$0xff]
      %v367 = vld [vmem:[#allocation2 + $0x8] sm:$0xff]
      %v368 = vld [vmem:[#allocation2 + $0x10] sm:$0xff]
      %v369 = vld [vmem:[#allocation2 + $0x18] sm:$0xff]
      %v370 = vld [vmem:[#allocation2 + $0x20] sm:$0xff]
      %v371 = vld [vmem:[#allocation2 + $0x28] sm:$0xff]
      %v372 = vld [vmem:[#allocation2 + $0x30] sm:$0x7]
      %v373 = vld [vmem:[#allocation2 + $0x38] sm:$0x7]
      %375 = vset.pattern.permute.xlu0 0
      %376 = vperm.xlu0 %375, %v250
      %v377 = vpop.permute.xlu0 %376
      %vm379 = vcmask 220160
      %v381 = vsel %vm379, %v247, 0
      %vm383 = vcmask 1042432
      %v385 = vsel %vm383, %v372, 0
      %v388 = vsel %vm383, %v373, 0
      %390 = vmatprep.subr.mxu0 %v367
      %391 = vmatpush1.msra.mxu0 %v366
      %392 = vmatprep.subr.mxu0 %v369
      %393 = vmatpush1.msra.mxu0 %v368
      %394 = vmatprep.subr.mxu0 %v371
      %395 = vmatpush1.msra.mxu0 %v370
      %396 = vmatprep.subr.mxu0 %v388
      %397 = vmatpush1.msra.mxu0 %v385
      %398 = vmatprep.subr.mxu0 0.0
      %399 = vmatpush1.msra.mxu0 0.0
      %400 = vmatprep.subr.mxu0 0.0
      %401 = vmatpush1.msra.mxu0 0.0
      %402 = vmatprep.subr.mxu0 0.0
      %403 = vmatpush1.msra.mxu0 0.0
      %404 = vmatprep.subr.mxu0 0.0
      %405 = vmatpush1.msra.mxu0 0.0
      %406 = vmatprep.subr.mxu0 0.0
      %407 = vmatpush1.msra.mxu0 0.0
      %408 = vmatprep.subr.mxu0 0.0
      %409 = vmatpush1.msra.mxu0 0.0
      %410 = vmatprep.subr.mxu0 0.0
      %411 = vmatpush1.msra.mxu0 0.0
      %412 = vmatprep.subr.mxu0 0.0
      %413 = vmatpush1.msra.mxu0 0.0
      %414 = vmatprep.subr.mxu0 0.0
      %415 = vmatpush1.msra.mxu0 0.0
      %416 = vmatprep.subr.mxu0 0.0
      %417 = vmatpush1.msra.mxu0 0.0
      %418 = vmatprep.subr.mxu0 0.0
      %419 = vmatpush1.msra.mxu0 0.0
      %420 = vmatprep.subr.mxu0 0.0
      %421 = vmatpush1.msra.mxu0 0.0
      %422 = vmatprep.subr.mxu0 0.0
      %423 = vmatpush1.msra.mxu0 0.0
      %424 = vmatprep.subr.mxu0 0.0
      %425 = vmatpush1.msra.mxu0 0.0
      %426 = vmatprep.subr.mxu0 0.0
      %427 = vmatpush1.msra.mxu0 0.0
      %428 = vmatprep.subr.mxu0 0.0
      %429 = vmatpush1.msra.mxu0 0.0
      %430 = vmatprep.subr.mxu0 0.0
      %431 = vmatpush1.msra.mxu0 0.0
      %432 = vmatprep.subr.mxu0 0.0
      %433 = vmatpush1.msra.mxu0 0.0
      %434 = vmatprep.subr.mxu0 0.0
      %435 = vmatpush1.msra.mxu0 0.0
      %436 = vmatprep.subr.mxu0 0.0
      %437 = vmatpush1.msra.mxu0 0.0
      %438 = vmatprep.subr.mxu0 0.0
      %439 = vmatpush1.msra.mxu0 0.0
      %440 = vmatprep.subr.mxu0 0.0
      %441 = vmatpush1.msra.mxu0 0.0
      %442 = vmatprep.subr.mxu0 0.0
      %443 = vmatpush1.msra.mxu0 0.0
      %444 = vmatprep.subr.mxu0 0.0
      %445 = vmatpush1.msra.mxu0 0.0
      %446 = vmatprep.subr.mxu0 0.0
      %447 = vmatpush1.msra.mxu0 0.0
      %448 = vmatprep.subr.mxu0 0.0
      %449 = vmatpush1.msra.mxu0 0.0
      %450 = vmatprep.subr.mxu0 0.0
      %451 = vmatpush1.msra.mxu0 0.0
      %452 = vmatprep.subr.mxu0 0.0
      %453 = vmatpush1.msra.mxu0 0.0
      %454 = vmatprep.mubr.f32.mxu0 0.0
      %455 = vmatmul.mubr.f32.gmra.mrb[0].mxu0 %v381
      %v456 = vpop.f32.mrb[0].mxu0
      %v457 = vadd.f32 %v377, %v456
      %v458 = vpop.f32.mrb[0].mxu0
      %v459 = vadd.f32 %v377, %v458
      %460 = vdwg.mxu0
      %v461 = vmax.f32 %v457, 0.0
      %v462 = vmax.f32 %v459, 0.0
      %463 = vst [vmem:[#allocation3] sm:$0x3f] %v461
      %464 = vst [vmem:[#allocation3 + $0x8] sm:$0x3f] %v462
      %v467 = vrot.slane %v461, 2
      %v468 = vrot.slane %v462, 2
      %469 = vrot.lane.b32.xlu0 %v467, 127
      %v470 = vpop.permute.xlu0 %469
      %471 = vrot.lane.b32.xlu0 %v468, 127
      %v472 = vpop.permute.xlu0 %471
      %v473 = vsel %vm265, %v470, %v472
      %476 = vst [vmem:[#allocation3] sm:$0xc0] %v473
      %vm477 = vcmask 1039366
      %478 = vst.msk [vmem:[#allocation3 + $0x8] sm:$0xc0] %vm477, %v472
      %479 = vst [vmem:[#allocation3 + $0x10] sm:$0xf] %v473
      %vm480 = vcmask 1035264
      %481 = vst.msk [vmem:[#allocation3 + $0x18] sm:$0xf] %vm480, %v472
      %v482 = vrot.slane %v461, 4
      %v483 = vrot.slane %v462, 4
      %484 = vrot.lane.b32.xlu0 %v482, 126
      %v485 = vpop.permute.xlu0 %484
      %486 = vrot.lane.b32.xlu0 %v483, 126
      %v487 = vpop.permute.xlu0 %486
      %v488 = vsel %vm278, %v485, %v487
      %491 = vst [vmem:[#allocation3 + $0x10] sm:$0xf0] %v488
      %vm492 = vcmask 1031172
      %493 = vst.msk [vmem:[#allocation3 + $0x18] sm:$0xf0] %vm492, %v487
      %494 = vst [vmem:[#allocation3 + $0x20] sm:$0x3] %v488
      %vm495 = vcmask 1025024
      %496 = vst.msk [vmem:[#allocation3 + $0x28] sm:$0x3] %vm495, %v487
      %v497 = vrot.slane %v461, 6
      %v498 = vrot.slane %v462, 6
      %499 = vrot.lane.b32.xlu0 %v497, 112
      %v500 = vpop.permute.xlu0 %499
      %501 = vrot.lane.b32.xlu0 %v498, 112
      %v502 = vpop.permute.xlu0 %501
      %v503 = vsel %vm294, %v500, %v502
      %506 = vst [vmem:[#allocation3 + $0x20] sm:$0xfc] %v503
      %vm507 = vcmask 916482
      %508 = vst.msk [vmem:[#allocation3 + $0x28] sm:$0xfc] %vm507, %v502
      %509 = vrot.lane.b32.xlu0 %v461, 111
      %v510 = vpop.permute.xlu0 %509
      %511 = vrot.lane.b32.xlu0 %v462, 111
      %v512 = vpop.permute.xlu0 %511
      %v513 = vsel %vm306, %v510, %v512
      %516 = vst [vmem:[#allocation3 + $0x30] sm:$0x3f] %v513
      %vm517 = vcmask 906240
      %518 = vst.msk [vmem:[#allocation3 + $0x38] sm:$0x3f] %vm517, %v512
      %519 = vrot.lane.b32.xlu0 %v467, 110
      %v520 = vpop.permute.xlu0 %519
      %521 = vrot.lane.b32.xlu0 %v468, 110
      %v522 = vpop.permute.xlu0 %521
      %v523 = vsel %vm319, %v520, %v522
      %526 = vst [vmem:[#allocation3 + $0x30] sm:$0xc0] %v523
      %vm527 = vcmask 900102
      %528 = vst.msk [vmem:[#allocation3 + $0x38] sm:$0xc0] %vm527, %v522
      %529 = vst [vmem:[#allocation3 + $0x40] sm:$0xf] %v523
      %vm530 = vcmask 896000
      %531 = vst.msk [vmem:[#allocation3 + $0x48] sm:$0xf] %vm530, %v522
      %532 = vrot.lane.b32.xlu0 %v482, 96
      %v533 = vpop.permute.xlu0 %532
      %534 = vrot.lane.b32.xlu0 %v483, 96
      %v535 = vpop.permute.xlu0 %534
      %v536 = vsel %vm335, %v533, %v535
      %539 = vst [vmem:[#allocation3 + $0x40] sm:$0xf0] %v536
      %vm540 = vcmask 785412
      %541 = vst.msk [vmem:[#allocation3 + $0x48] sm:$0xf0] %vm540, %v535
      %542 = vst [vmem:[#allocation3 + $0x50] sm:$0x3] %v536
      %vm543 = vcmask 779264
      %544 = vst.msk [vmem:[#allocation3 + $0x58] sm:$0x3] %vm543, %v535
      %545 = vrot.lane.b32.xlu0 %v497, 95
      %v546 = vpop.permute.xlu0 %545
      %547 = vrot.lane.b32.xlu0 %v498, 95
      %v548 = vpop.permute.xlu0 %547
      %v549 = vsel %vm348, %v546, %v548
      %552 = vst [vmem:[#allocation3 + $0x50] sm:$0xfc] %v549
      %vm553 = vcmask 777218
      %554 = vst.msk [vmem:[#allocation3 + $0x58] sm:$0xfc] %vm553, %v548
      %555 = vrot.lane.b32.xlu0 %v461, 94
      %v556 = vpop.permute.xlu0 %555
      %557 = vrot.lane.b32.xlu0 %v462, 94
      %v558 = vpop.permute.xlu0 %557
      %v559 = vsel %vm359, %v556, %v558
      %562 = vst [vmem:[#allocation3 + $0x60] sm:$0x3f] %v559
      %vm563 = vcmask 766976
      %564 = vst.msk [vmem:[#allocation3 + $0x68] sm:$0x3f] %vm563, %v558
      %v565 = vld [vmem:[#allocation3] sm:$0xff]
      %v566 = vld [vmem:[#allocation3 + $0x8] sm:$0xff]
      %v567 = vld [vmem:[#allocation3 + $0x10] sm:$0xff]
      %v568 = vld [vmem:[#allocation3 + $0x18] sm:$0xff]
      %v569 = vld [vmem:[#allocation3 + $0x20] sm:$0xff]
      %v570 = vld [vmem:[#allocation3 + $0x28] sm:$0xff]
      %v571 = vld [vmem:[#allocation3 + $0x30] sm:$0xff]
      %v572 = vld [vmem:[#allocation3 + $0x38] sm:$0xff]
      %v573 = vld [vmem:[#allocation3 + $0x40] sm:$0xff]
      %v574 = vld [vmem:[#allocation3 + $0x48] sm:$0xff]
      %v575 = vld [vmem:[#allocation3 + $0x50] sm:$0xff]
      %v576 = vld [vmem:[#allocation3 + $0x58] sm:$0xff]
      %v577 = vld [vmem:[#allocation3 + $0x60] sm:$0x3f]
      %v578 = vld [vmem:[#allocation3 + $0x68] sm:$0x3f]
      %580 = vset.pattern.permute.xlu0 0
      %581 = vperm.xlu0 %580, %v251
      %v582 = vpop.permute.xlu0 %581
      %585 = vset.pattern.permute.xlu0 0
      %586 = vperm.xlu0 %585, %v252
      %v587 = vpop.permute.xlu0 %586
      %vm589 = vcmask 441344
      %v591 = vsel %vm589, %v248, 0
      %v594 = vsel %vm589, %v249, 0
      %vm596 = vcmask 1045504
      %v598 = vsel %vm596, %v577, 0
      %v601 = vsel %vm596, %v578, 0
      %603 = vmatprep.subr.mxu0 %v566
      %604 = vmatpush1.msra.mxu0 %v565
      %605 = vmatprep.subr.mxu0 %v568
      %606 = vmatpush1.msra.mxu0 %v567
      %607 = vmatprep.subr.mxu0 %v570
      %608 = vmatpush1.msra.mxu0 %v569
      %609 = vmatprep.subr.mxu0 %v572
      %610 = vmatpush1.msra.mxu0 %v571
      %611 = vmatprep.subr.mxu0 %v574
      %612 = vmatpush1.msra.mxu0 %v573
      %613 = vmatprep.subr.mxu0 %v576
      %614 = vmatpush1.msra.mxu0 %v575
      %615 = vmatprep.subr.mxu0 %v601
      %616 = vmatpush1.msra.mxu0 %v598
      %617 = vmatprep.subr.mxu0 0.0
      %618 = vmatpush1.msra.mxu0 0.0
      %619 = vmatprep.subr.mxu0 0.0
      %620 = vmatpush1.msra.mxu0 0.0
      %621 = vmatprep.subr.mxu0 0.0
      %622 = vmatpush1.msra.mxu0 0.0
      %623 = vmatprep.subr.mxu0 0.0
      %624 = vmatpush1.msra.mxu0 0.0
      %625 = vmatprep.subr.mxu0 0.0
      %626 = vmatpush1.msra.mxu0 0.0
      %627 = vmatprep.subr.mxu0 0.0
      %628 = vmatpush1.msra.mxu0 0.0
      %629 = vmatprep.subr.mxu0 0.0
      %630 = vmatpush1.msra.mxu0 0.0
      %631 = vmatprep.subr.mxu0 0.0
      %632 = vmatpush1.msra.mxu0 0.0
      %633 = vmatprep.subr.mxu0 0.0
      %634 = vmatpush1.msra.mxu0 0.0
      %635 = vmatprep.subr.mxu0 0.0
      %636 = vmatpush1.msra.mxu0 0.0
      %637 = vmatprep.subr.mxu0 0.0
      %638 = vmatpush1.msra.mxu0 0.0
      %639 = vmatprep.subr.mxu0 0.0
      %640 = vmatpush1.msra.mxu0 0.0
      %641 = vmatprep.subr.mxu0 0.0
      %642 = vmatpush1.msra.mxu0 0.0
      %643 = vmatprep.subr.mxu0 0.0
      %644 = vmatpush1.msra.mxu0 0.0
      %645 = vmatprep.subr.mxu0 0.0
      %646 = vmatpush1.msra.mxu0 0.0
      %647 = vmatprep.subr.mxu0 0.0
      %648 = vmatpush1.msra.mxu0 0.0
      %649 = vmatprep.subr.mxu0 0.0
      %650 = vmatpush1.msra.mxu0 0.0
      %651 = vmatprep.subr.mxu0 0.0
      %652 = vmatpush1.msra.mxu0 0.0
      %653 = vmatprep.subr.mxu0 0.0
      %654 = vmatpush1.msra.mxu0 0.0
      %655 = vmatprep.subr.mxu0 0.0
      %656 = vmatpush1.msra.mxu0 0.0
      %657 = vmatprep.subr.mxu0 0.0
      %658 = vmatpush1.msra.mxu0 0.0
      %659 = vmatprep.subr.mxu0 0.0
      %660 = vmatpush1.msra.mxu0 0.0
      %661 = vmatprep.subr.mxu0 0.0
      %662 = vmatpush1.msra.mxu0 0.0
      %663 = vmatprep.subr.mxu0 0.0
      %664 = vmatpush1.msra.mxu0 0.0
      %665 = vmatprep.subr.mxu0 0.0
      %666 = vmatpush1.msra.mxu0 0.0
      %667 = vmatprep.mubr.f32.mxu0 0.0
      %668 = vmatmul.mubr.f32.gmra.mrb[0].mxu0 %v591
      %v669 = vpop.f32.mrb[0].mxu0
      %v670 = vadd.f32 %v582, %v669
      %v671 = vpop.f32.mrb[0].mxu0
      %v672 = vadd.f32 %v582, %v671
      %673 = vmatprep.mubr.f32.mxu0 0.0
      %674 = vmatmul.mubr.f32.gmra.mrb[0].mxu0 %v594
      %v675 = vpop.f32.mrb[0].mxu0
      %v676 = vadd.f32 %v587, %v675
      %v677 = vpop.f32.mrb[0].mxu0
      %v678 = vadd.f32 %v587, %v677
      %679 = vdwg.mxu0
      %vm680 = vcmask 97280
      %681 = vst.msk [vmem:[%s224] sm:$0xff] %vm680, %v670
      %vm682 = vcmask 91136
      %683 = vst.msk [vmem:[%s224 + $0x10] sm:$0x3] %vm682, %v676
      %686 = vrot.lane.b32.xlu0 %v670, 124
      %v687 = vpop.permute.xlu0 %686
      %688 = vrot.lane.b32.xlu0 %v676, 124
      %v689 = vpop.permute.xlu0 %688
      %vm692 = vcmask 195680
      %693 = vst.msk [vmem:[%s224] sm:$0xff] %vm692, %v687
      %vm694 = vcmask 189536
      %695 = vst.msk [vmem:[%s224 + $0x10] sm:$0x3] %vm694, %v689
      %696 = vrot.lane.b32.xlu0 %v670, 120
      %v697 = vpop.permute.xlu0 %696
      %698 = vrot.lane.b32.xlu0 %v676, 120
      %v699 = vpop.permute.xlu0 %698
      %vm702 = vcmask 294080
      %703 = vst.msk [vmem:[%s224] sm:$0xff] %vm702, %v697
      %vm704 = vcmask 287936
      %705 = vst.msk [vmem:[%s224 + $0x10] sm:$0x3] %vm704, %v699
      %706 = vrot.lane.b32.xlu0 %v670, 116
      %v707 = vpop.permute.xlu0 %706
      %708 = vrot.lane.b32.xlu0 %v676, 116
      %v709 = vpop.permute.xlu0 %708
      %vm712 = vcmask 392480
      %713 = vst.msk [vmem:[%s224] sm:$0xff] %vm712, %v707
      %vm714 = vcmask 386336
      %715 = vst.msk [vmem:[%s224 + $0x10] sm:$0x3] %vm714, %v709
      %716 = vrot.lane.b32.xlu0 %v670, 112
      %v717 = vpop.permute.xlu0 %716
      %718 = vrot.lane.b32.xlu0 %v676, 112
      %v719 = vpop.permute.xlu0 %718
      %vm722 = vcmask 490880
      %723 = vst.msk [vmem:[%s224] sm:$0xff] %vm722, %v717
      %vm724 = vcmask 484736
      %725 = vst.msk [vmem:[%s224 + $0x10] sm:$0x3] %vm724, %v719
      %726 = vrot.lane.b32.xlu0 %v670, 108
      %v727 = vpop.permute.xlu0 %726
      %728 = vrot.lane.b32.xlu0 %v676, 108
      %v729 = vpop.permute.xlu0 %728
      %vm732 = vcmask 589280
      %733 = vst.msk [vmem:[%s224] sm:$0xff] %vm732, %v727
      %vm734 = vcmask 583136
      %735 = vst.msk [vmem:[%s224 + $0x10] sm:$0x3] %vm734, %v729
      %736 = vrot.lane.b32.xlu0 %v670, 104
      %v737 = vpop.permute.xlu0 %736
      %738 = vrot.lane.b32.xlu0 %v676, 104
      %v739 = vpop.permute.xlu0 %738
      %vm742 = vcmask 687680
      %743 = vst.msk [vmem:[%s224] sm:$0xff] %vm742, %v737
      %vm744 = vcmask 681536
      %745 = vst.msk [vmem:[%s224 + $0x10] sm:$0x3] %vm744, %v739
      %746 = vrot.lane.b32.xlu0 %v670, 100
      %v747 = vpop.permute.xlu0 %746
      %748 = vrot.lane.b32.xlu0 %v676, 100
      %v749 = vpop.permute.xlu0 %748
      %vm752 = vcmask 786080
      %753 = vst.msk [vmem:[%s224] sm:$0xff] %vm752, %v747
      %vm754 = vcmask 779936
      %755 = vst.msk [vmem:[%s224 + $0x10] sm:$0x3] %vm754, %v749
      %758 = vrot.lane.b32.xlu0 %v672, 96
      %v759 = vpop.permute.xlu0 %758
      %760 = vrot.lane.b32.xlu0 %v678, 96
      %v761 = vpop.permute.xlu0 %760
      %vm764 = vcmask 884480
      %765 = vst.msk [vmem:[%s224] sm:$0xff] %vm764, %v759
      %vm766 = vcmask 878336
      %767 = vst.msk [vmem:[%s224 + $0x10] sm:$0x3] %vm766, %v761
      %768 = vrot.lane.b32.xlu0 %v672, 92
      %v769 = vpop.permute.xlu0 %768
      %770 = vrot.lane.b32.xlu0 %v678, 92
      %v771 = vpop.permute.xlu0 %770
      %vm774 = vcmask 982880
      %775 = vst.msk [vmem:[%s224] sm:$0xff] %vm774, %v769
      %vm776 = vcmask 976736
      %777 = vst.msk [vmem:[%s224 + $0x10] sm:$0x3] %vm776, %v771
      %778 = vrot.lane.b32.xlu0 %v672, 88
      %v779 = vpop.permute.xlu0 %778
      %780 = vrot.lane.b32.xlu0 %v678, 88
      %v781 = vpop.permute.xlu0 %780
      %vm784 = vcmask 1048512
      %785 = vst.msk [vmem:[%s224] sm:$0xff] %vm784, %v779
      %vm786 = vcmask 31744
      %787 = vst.msk [vmem:[%s224 + $0x8] sm:$0xff] %vm786, %v779
      %vm788 = vcmask 1042368
      %789 = vst.msk [vmem:[%s224 + $0x10] sm:$0x3] %vm788, %v781
      %vm790 = vcmask 25600
      %791 = vst.msk [vmem:[%s224 + $0x18] sm:$0x3] %vm790, %v781
      %792 = vrot.lane.b32.xlu0 %v672, 84
      %v793 = vpop.permute.xlu0 %792
      %794 = vrot.lane.b32.xlu0 %v678, 84
      %v795 = vpop.permute.xlu0 %794
      %vm798 = vcmask 130080
      %799 = vst.msk [vmem:[%s224 + $0x8] sm:$0xff] %vm798, %v793
      %vm800 = vcmask 123936
      %801 = vst.msk [vmem:[%s224 + $0x18] sm:$0x3] %vm800, %v795
      %p802 = scmp.lt.s32.totalorder %s16, 1
      %s803 = scalar_select %p802, %s16, 1
      %s804 = smul.addr %s803, 4
      %s805 = smul.addr %s804, 8
      %s806 = scalar_lea.vmem %s5, %s805
      // Predicated region
      $region41: #{tpu_custom_call.1} parent=39 // pred_check
        %p807 = pneg %p144
      $region42: #{tpu_custom_call.1} parent=39 // pred_check_branch
        %809 = sbr.rel (%p807) target = $region44
      $region43: #{tpu_custom_call.1} parent=39 // pred_region
        _
      $region44: #{tpu_custom_call.1} parent=39 // pred_fallthru
        _
    $region40: #{tpu_custom_call.1} parent=5 // pred_fallthru
      _
    %p810 = scmp.le.s32.totalorder 2, %s11
    // Predicated region
    $region45: #{tpu_custom_call.1} parent=5 // pred_check
      %p811 = pneg %p810
    $region46: #{tpu_custom_call.1} parent=5 // pred_check_branch
      %813 = sbr.rel (%p811) target = $region48
    $region47: #{tpu_custom_call.1} parent=5 // pred_region
      %s814 = ssub.s32 %s11, 2
      // Predicated region
      $region49: #{tpu_custom_call.1} parent=47 // pred_check
        %p815 = pneg %p150
      $region50: #{tpu_custom_call.1} parent=47 // pred_check_branch
        %817 = sbr.rel (%p815) target = $region52
      $region51: #{tpu_custom_call.1} parent=47 // pred_region
        %p818 = scmp.lt.s32.totalorder %s17, 1
        %s819 = scalar_select %p818, %s17, 1
        %s820 = smul.addr %s819, 4
        %s821 = smul.addr %s820, 8
        %s822 = scalar_lea.vmem %s5, %s821
      $region52: #{tpu_custom_call.1} parent=47 // pred_fallthru
        _
    $region48: #{tpu_custom_call.1} parent=5 // pred_fallthru
      _
  $region6: #{tpu_custom_call.1} parent=0 // loop_footer
    %s15 = sadd.s32 1, %s11
  $region7: #{tpu_custom_call.1} parent=0 // loop_footer_branch
    %10 = sbr.rel target = $region3
  $region8: #{tpu_custom_call.1} parent=0 // loop_exit
    _

</llo_original>
